<compile_context>
chip_gen: v7x
topology: tpu7x:2x2x1
jax: 0.10.0
libtpu: 0.0.40
codegen_flags: <defaults>
</compile_context>

<pallas_src>
import functools

import numpy as np
import jax
import jax.numpy as jnp
from jax.experimental import pallas as pl
from jax.experimental.pallas import tpu as pltpu

# ---------------------------------------------------------------------------
# Small synthetic config (shapes implied by the module's __init__)
# ---------------------------------------------------------------------------
VISION_HIDDEN = 32        # config.vision_config.hidden_size
TEXT_HIDDEN = 64          # config.text_config.hidden_size
IMAGE_SIZE = 32           # config.vision_config.image_size
PATCH_SIZE = 8            # config.vision_config.patch_size
MM_TOKENS_PER_IMAGE = 4   # config.mm_tokens_per_image
LAYER_NORM_EPS = 1e-6     # config.vision_config.layer_norm_eps

PATCHES_PER_IMAGE = IMAGE_SIZE // PATCH_SIZE            # 4
NUM_PATCHES = PATCHES_PER_IMAGE ** 2                    # 16
TOKENS_PER_SIDE = int(MM_TOKENS_PER_IMAGE ** 0.5)       # 2
POOL_K = PATCHES_PER_IMAGE // TOKENS_PER_SIDE           # 2 (AvgPool2d kernel)


# ---------------------------------------------------------------------------
# Fused projector kernel: window-mean pool -> Gemma3RMSNorm -> projection
# ---------------------------------------------------------------------------
def _mm_projector_kernel(x_ref, ns_ref, w_ref, o_ref, *, K, inv_win, eps):
    # x_ref : (G*K, T, K, V)  band of patch rows; dims = (patch_row, tok_col, win_col, V)
    # ns_ref: (1, V) float32  == 1 + rmsnorm weight (hoisted in wrapper)
    # w_ref : (V, Hp)         mm_input_projection_weight (lane-padded)
    # o_ref : (G*T, Hp)
    GK, T, _, V = x_ref.shape
    G = GK // K

    # --- AvgPool2d(kernel=stride=K): f32-accumulating per-window VPU adds. ---
    # Column windows first; the accumulator is only (G*K, T, V) in f32 — the
    # input block is never materialized as a full f32 copy.
    acc = x_ref[:, :, 0, :].astype(jnp.float32)
    for k2 in range(1, K):
        acc = acc + x_ref[:, :, k2, :].astype(jnp.float32)
    # Row windows: regrouping the leading (patch-row) axis is free.
    acc = acc.reshape(G, K, T, V)
    pooled = acc[:, 0]
    for k1 in range(1, K):
        pooled = pooled + acc[:, k1]
    pooled = pooled * inv_win                                   # (G, T, V) f32

    # --- Gemma3RMSNorm: statistics & scaling in float32 (as in PyTorch). ---
    var = jnp.mean(pooled * pooled, axis=-1, keepdims=True)
    normed = pooled * jax.lax.rsqrt(var + eps)
    normed = normed * ns_ref[...]                               # (1, V) f32 scale
    # `.type_as(x)` before the matmul: bf16 inputs feed the MXU at bf16 rate.
    normed = normed.astype(x_ref.dtype)

    # --- Projection matmul (MXU), f32 accumulation, lane-dense store. ---
    out = jnp.dot(normed.reshape(G * T, V), w_ref[...],
                  preferred_element_type=jnp.float32)
    o_ref[...] = out.astype(o_ref.dtype)


def _pick_token_rows_per_step(total_tok_rows, T, K, V, in_itemsize):
    """Token rows (= bands of K patch rows) processed per grid step.

    Dtype/VMEM-aware: output rows per step capped at 256 (<=2-byte dtypes) /
    128 (f32), input pipeline buffer capped at ~8 MiB, and we prefer >=4 grid
    steps (DMA/compute overlap + both v7x TCs) while keeping >=64 output rows.
    """
    full_out = total_tok_rows * T
    row_cap = 256 if in_itemsize <= 2 else 128
    in_budget = 8 << 20

    def rows_out(g):
        return g * T

    def in_bytes(g):
        return g * K * T * K * V * in_itemsize

    def aligned(g):
        r = rows_out(g)
        return r == full_out or r % 8 == 0

    divisors = [g for g in range(1, total_tok_rows + 1) if total_tok_rows % g == 0]
    cands = [g for g in divisors if aligned(g)] or [total_tok_rows]
    fitting = [g for g in cands if rows_out(g) <= row_cap and in_bytes(g) <= in_budget]
    if not fitting:
        return min(cands)                 # best effort for ragged / huge-V cases
    best = max(fitting)
    for g in sorted(fitting, reverse=True):
        if total_tok_rows // g >= 4 and rows_out(g) >= 64:
            best = g
            break
    return best


def gemma3_mm_projector(vision_outputs, norm_weight, proj_weight,
                        *, mm_tokens_per_image=MM_TOKENS_PER_IMAGE,
                        eps=LAYER_NORM_EPS):
    """Gemma3MultiModalProjector.forward: (B, N, V) -> (B, mm_tokens, H)."""
    B, N, V = vision_outputs.shape
    P = int(round(N ** 0.5))
    T = int(round(mm_tokens_per_image ** 0.5))
    K = P // T
    assert P * P == N and T * T == mm_tokens_per_image and T * K == P
    assert proj_weight.shape[0] == V
    H = proj_weight.shape[1]

    # Free reshape (no transpose, no HBM copy): (B, N, V) -> (B*P, T, K, V)
    # i.e. (patch_row, token_col, within-window col, V).
    xr = vision_outputs.reshape(B * P, T, K, V)

    # Hoisted RMSNorm scale (1 + weight), kept in f32 (PyTorch semantics).
    ns = (1.0 + norm_weight.astype(jnp.float32)).reshape(1, V)

    # Lane-dense output: pad projection dim to a multiple of 128.  Real Gemma3
    # (H=2560) needs no padding; in a real model do this once at weight load.
    Hp = ((H + 127) // 128) * 128
    w = proj_weight if Hp == H else jnp.pad(proj_weight, ((0, 0), (0, Hp - H)))

    total_tok_rows = B * T
    itemsize = int(jnp.dtype(vision_outputs.dtype).itemsize)
    G = _pick_token_rows_per_step(total_tok_rows, T, K, V, itemsize)
    rows_blk = G * T
    grid = (total_tok_rows // G,)

    in_block_bytes = G * K * T * K * V * itemsize
    out_block_bytes = rows_blk * Hp * itemsize
    w_bytes = V * Hp * int(jnp.dtype(w.dtype).itemsize)
    ns_bytes = 8 * max(V, 128) * 4
    acc_bytes = G * K * T * V * 4
    mm_bytes = rows_blk * Hp * 4

    kernel = functools.partial(_mm_projector_kernel,
                               K=K, inv_win=1.0 / (K * K), eps=eps)

    def _run(single_buffer_consts):
        const_kwargs = ({"pipeline_mode": pl.Buffered(1)}
                        if single_buffer_consts else {})
        n_const_bufs = 1 if single_buffer_consts else 2
        vmem_limit = (2 * (in_block_bytes + out_block_bytes)
                      + n_const_bufs * (w_bytes + ns_bytes)
                      + 4 * acc_bytes + 2 * mm_bytes + (8 << 20))
        vmem_limit = int(min(max(vmem_limit, 16 << 20), 96 << 20))
        return pl.pallas_call(
            kernel,
            out_shape=jax.ShapeDtypeStruct((B * T * T, Hp), vision_outputs.dtype),
            grid=grid,
            in_specs=[
                pl.BlockSpec((G * K, T, K, V), lambda r: (r, 0, 0, 0)),
                pl.BlockSpec((1, V), lambda r: (0, 0), **const_kwargs),
                pl.BlockSpec((V, Hp), lambda r: (0, 0), **const_kwargs),
            ],
            out_specs=pl.BlockSpec((rows_blk, Hp), lambda r: (r, 0)),
            compiler_params=pltpu.CompilerParams(
                dimension_semantics=("parallel",),
                vmem_limit_bytes=vmem_limit),
        )(xr, ns, w)

    try:
        out = _run(True)          # constant operands single-buffered
    except Exception:             # fallback if pipeline_mode=Buffered(1) unsupported
        out = _run(False)

    if Hp != H:
        out = out[:, :H]
    return out.reshape(B, T * T, H)


# ---------------------------------------------------------------------------
# Pure-JAX reference replicating the PyTorch module exactly
# ---------------------------------------------------------------------------
def projector_ref(vision_outputs, norm_w, proj_w, *, eps=LAYER_NORM_EPS,
                  mm_tokens_per_image=MM_TOKENS_PER_IMAGE):
    B, N, V = vision_outputs.shape
    P = int(round(N ** 0.5))
    T = int(round(mm_tokens_per_image ** 0.5))
    K = P // T
    x = jnp.transpose(vision_outputs, (0, 2, 1)).reshape(B, V, P, P)
    pooled = x.reshape(B, V, T, K, T, K).mean(axis=(3, 5))
    pooled = pooled.reshape(B, V, T * T).transpose(0, 2, 1)        # (B, T2, V)
    xf = pooled.astype(jnp.float32)
    normed = xf * jax.lax.rsqrt(jnp.mean(xf * xf, -1, keepdims=True) + eps)
    normed = normed * (1.0 + norm_w.reshape(-1).astype(jnp.float32))
    out = jnp.matmul(normed.astype(vision_outputs.dtype).astype(jnp.float32),
                     proj_w.astype(jnp.float32),
                     precision=jax.lax.Precision.HIGHEST)
    return out.astype(vision_outputs.dtype)


# NOTE: the SiglipVisionModel vision tower, language_model forward,
# prepare_attn_masks and masked_scatter_ glue of Gemma3ForConditionalGeneration
# are external modules and not part of the Gemma3MultiModalProjector spec;
# only the projector is implemented here.

# ---------------------------------------------------------------------------
if __name__ == "__main__":
    key = jax.random.PRNGKey(0)
    k_x, k_nw, k_pw = jax.random.split(key, 3)

    B = 2
    vision_outputs = jax.random.normal(
        k_x, (B, NUM_PATCHES, VISION_HIDDEN), dtype=jnp.float32)
    norm_w = 0.1 * jax.random.normal(
        k_nw, (VISION_HIDDEN,), dtype=jnp.float32)
    proj_w = 0.02 * jax.random.normal(
        k_pw, (VISION_HIDDEN, TEXT_HIDDEN), dtype=jnp.float32)

    # f32 path
    out = jax.block_until_ready(gemma3_mm_projector(vision_outputs, norm_w, proj_w))
    ref = projector_ref(vision_outputs, norm_w, proj_w)
    np.testing.assert_allclose(np.asarray(out), np.asarray(ref),
                               rtol=1e-3, atol=1e-3)

    # bf16 path (bf16 MXU operands, f32 RMSNorm statistics) vs f32 reference
    out_bf16 = jax.block_until_ready(
        gemma3_mm_projector(vision_outputs.astype(jnp.bfloat16),
                            norm_w.astype(jnp.bfloat16),
                            proj_w.astype(jnp.bfloat16)))
    np.testing.assert_allclose(np.asarray(out_bf16.astype(jnp.float32)),
                               np.asarray(ref), rtol=5e-2, atol=5e-2)

    print("KERNEL_OK")
</pallas_src>

<mosaic_0001>
module attributes {stable_mosaic.version = 11 : i64} {
  func.func @_mm_projector_kernel(%arg0: i32, %arg1: memref<8x2x2x32xf32, #tpu.memory_space<vmem>>, %arg2: memref<1x32xf32, #tpu.memory_space<vmem>>, %arg3: memref<32x128xf32, #tpu.memory_space<vmem>>, %arg4: memref<8x128xf32, #tpu.memory_space<vmem>>) attributes {dimension_semantics = [#tpu.dimension_semantics<parallel>], iteration_bounds = array<i64: 1>, scalar_prefetch = 0 : i64, scratch_operands = 0 : i64, tpu.core_type = #tpu.core_type<tc>, window_params = [{transform_indices = @transform_0, window_bounds = array<i64: 8, 2, 2, 32>}, {pipeline_mode = #tpu.pipeline_mode<synchronous>, transform_indices = @transform_1, window_bounds = array<i64: 1, 32>}, {pipeline_mode = #tpu.pipeline_mode<synchronous>, transform_indices = @transform_2, window_bounds = array<i64: 32, 128>}, {transform_indices = @transform_3, window_bounds = array<i64: 8, 128>}]} {
    %c0 = arith.constant 0 : index
    %c0_0 = arith.constant 0 : index
    %c0_1 = arith.constant 0 : index
    %c0_2 = arith.constant 0 : index
    %0 = vector.load %arg1[%c0, %c0_0, %c0_1, %c0_2] : memref<8x2x2x32xf32, #tpu.memory_space<vmem>>, vector<8x2x1x32xf32>
    %1 = vector.shape_cast %0 : vector<8x2x1x32xf32> to vector<8x2x32xf32>
    %c0_3 = arith.constant 0 : index
    %c0_4 = arith.constant 0 : index
    %c1 = arith.constant 1 : index
    %c0_5 = arith.constant 0 : index
    %2 = vector.load %arg1[%c0_3, %c0_4, %c1, %c0_5] : memref<8x2x2x32xf32, #tpu.memory_space<vmem>>, vector<8x2x1x32xf32>
    %3 = vector.shape_cast %2 : vector<8x2x1x32xf32> to vector<8x2x32xf32>
    %4 = arith.addf %1, %3 : vector<8x2x32xf32>
    %5 = vector.shape_cast %4 : vector<8x2x32xf32> to vector<4x2x2x32xf32>
    %6 = vector.extract_strided_slice %5 {offsets = [0, 0, 0, 0], sizes = [4, 1, 2, 32], strides = [1, 1, 1, 1]} : vector<4x2x2x32xf32> to vector<4x1x2x32xf32>
    %7 = vector.shape_cast %6 : vector<4x1x2x32xf32> to vector<4x2x32xf32>
    %8 = vector.extract_strided_slice %5 {offsets = [0, 1, 0, 0], sizes = [4, 1, 2, 32], strides = [1, 1, 1, 1]} : vector<4x2x2x32xf32> to vector<4x1x2x32xf32>
    %9 = vector.shape_cast %8 : vector<4x1x2x32xf32> to vector<4x2x32xf32>
    %10 = arith.addf %7, %9 : vector<4x2x32xf32>
    %cst = arith.constant 2.500000e-01 : f32
    %11 = vector.broadcast %cst : f32 to vector<4x2x32xf32>
    %12 = arith.mulf %10, %11 : vector<4x2x32xf32>
    %13 = arith.mulf %12, %12 : vector<4x2x32xf32>
    %cst_6 = arith.constant dense<0.000000e+00> : vector<4x2xf32>
    %14 = vector.multi_reduction <add>, %13, %cst_6 [2] : vector<4x2x32xf32> to vector<4x2xf32>
    %15 = vector.shape_cast %14 : vector<4x2xf32> to vector<4x2x1xf32>
    %cst_7 = arith.constant 3.200000e+01 : f32
    %16 = vector.broadcast %cst_7 : f32 to vector<4x2x1xf32>
    %17 = arith.divf %15, %16 : vector<4x2x1xf32>
    %cst_8 = arith.constant 9.99999997E-7 : f32
    %18 = vector.broadcast %cst_8 : f32 to vector<4x2x1xf32>
    %19 = arith.addf %17, %18 : vector<4x2x1xf32>
    %20 = math.rsqrt %19 : vector<4x2x1xf32>
    %21 = vector.broadcast %20 : vector<4x2x1xf32> to vector<4x2x32xf32>
    %22 = arith.mulf %12, %21 : vector<4x2x32xf32>
    %c0_9 = arith.constant 0 : index
    %c0_10 = arith.constant 0 : index
    %23 = vector.load %arg2[%c0_9, %c0_10] : memref<1x32xf32, #tpu.memory_space<vmem>>, vector<1x32xf32>
    %24 = vector.shape_cast %23 : vector<1x32xf32> to vector<1x1x32xf32>
    %25 = vector.broadcast %24 : vector<1x1x32xf32> to vector<4x2x32xf32>
    %26 = arith.mulf %22, %25 : vector<4x2x32xf32>
    %27 = vector.shape_cast %26 : vector<4x2x32xf32> to vector<8x32xf32>
    %c0_11 = arith.constant 0 : index
    %c0_12 = arith.constant 0 : index
    %28 = vector.load %arg3[%c0_11, %c0_12] : memref<32x128xf32, #tpu.memory_space<vmem>>, vector<32x128xf32>
    %cst_13 = arith.constant dense<0.000000e+00> : vector<8x128xf32>
    %29 = tpu.matmul %27, %28, %cst_13 {dimension_numbers = #tpu.dot_dimension_numbers<[1], [0], [0], [1], [0, 0, 1, 1], [], []>} : vector<8x32xf32>, vector<32x128xf32>, vector<8x128xf32> -> vector<8x128xf32>
    %c0_14 = arith.constant 0 : index
    %c0_15 = arith.constant 0 : index
    %30 = vector.load %arg4[%c0_14, %c0_15] : memref<8x128xf32, #tpu.memory_space<vmem>>, vector<8x128xf32>
    tpu.vector_store %arg4[%c0_14, %c0_15], %29 {strides = array<i32>} : memref<8x128xf32, #tpu.memory_space<vmem>>, vector<8x128xf32>,
    return
  }
  func.func @transform_0(%arg0: i32) -> (i32, i32, i32, i32) {
    %c0_i32 = arith.constant 0 : i32
    %c0_i32_0 = arith.constant 0 : i32
    %c0_i32_1 = arith.constant 0 : i32
    %c0_i32_2 = arith.constant 0 : i32
    return %arg0, %c0_i32, %c0_i32_0, %c0_i32_1 : i32, i32, i32, i32
  }
  func.func @transform_1(%arg0: i32) -> (i32, i32) {
    %c0_i32 = arith.constant 0 : i32
    %c0_i32_0 = arith.constant 0 : i32
    %c0_i32_1 = arith.constant 0 : i32
    return %c0_i32, %c0_i32_0 : i32, i32
  }
  func.func @transform_2(%arg0: i32) -> (i32, i32) {
    %c0_i32 = arith.constant 0 : i32
    %c0_i32_0 = arith.constant 0 : i32
    %c0_i32_1 = arith.constant 0 : i32
    return %c0_i32, %c0_i32_0 : i32, i32
  }
  func.func @transform_3(%arg0: i32) -> (i32, i32) {
    %c0_i32 = arith.constant 0 : i32
    %c0_i32_0 = arith.constant 0 : i32
    return %arg0, %c0_i32 : i32, i32
  }
}

module attributes {stable_mosaic.version = 11 : i64} {
  func.func @_mm_projector_kernel(%arg0: i32, %arg1: memref<8x2x2x32xf32, #tpu.memory_space<vmem>>, %arg2: memref<1x32xf32, #tpu.memory_space<vmem>>, %arg3: memref<32x128xf32, #tpu.memory_space<vmem>>, %arg4: memref<8x128xf32, #tpu.memory_space<vmem>>) attributes {dimension_semantics = [#tpu.dimension_semantics<parallel>], iteration_bounds = array<i64: 1>, scalar_prefetch = 0 : i64, scratch_operands = 0 : i64, tpu.core_type = #tpu.core_type<tc>, window_params = [{transform_indices = @transform_0, window_bounds = array<i64: 8, 2, 2, 32>}, {pipeline_mode = #tpu.pipeline_mode<synchronous>, transform_indices = @transform_1, window_bounds = array<i64: 1, 32>}, {pipeline_mode = #tpu.pipeline_mode<synchronous>, transform_indices = @transform_2, window_bounds = array<i64: 32, 128>}, {transform_indices = @transform_3, window_bounds = array<i64: 8, 128>}]} {
    %c0 = arith.constant 0 : index
    %c0_0 = arith.constant 0 : index
    %c0_1 = arith.constant 0 : index
    %c0_2 = arith.constant 0 : index
    %0 = vector.load %arg1[%c0, %c0_0, %c0_1, %c0_2] : memref<8x2x2x32xf32, #tpu.memory_space<vmem>>, vector<8x2x1x32xf32>
    %1 = vector.shape_cast %0 : vector<8x2x1x32xf32> to vector<8x2x32xf32>
    %c0_3 = arith.constant 0 : index
    %c0_4 = arith.constant 0 : index
    %c1 = arith.constant 1 : index
    %c0_5 = arith.constant 0 : index
    %2 = vector.load %arg1[%c0_3, %c0_4, %c1, %c0_5] : memref<8x2x2x32xf32, #tpu.memory_space<vmem>>, vector<8x2x1x32xf32>
    %3 = vector.shape_cast %2 : vector<8x2x1x32xf32> to vector<8x2x32xf32>
    %4 = arith.addf %1, %3 : vector<8x2x32xf32>
    %5 = vector.shape_cast %4 : vector<8x2x32xf32> to vector<4x2x2x32xf32>
    %6 = vector.extract_strided_slice %5 {offsets = [0, 0, 0, 0], sizes = [4, 1, 2, 32], strides = [1, 1, 1, 1]} : vector<4x2x2x32xf32> to vector<4x1x2x32xf32>
    %7 = vector.shape_cast %6 : vector<4x1x2x32xf32> to vector<4x2x32xf32>
    %8 = vector.extract_strided_slice %5 {offsets = [0, 1, 0, 0], sizes = [4, 1, 2, 32], strides = [1, 1, 1, 1]} : vector<4x2x2x32xf32> to vector<4x1x2x32xf32>
    %9 = vector.shape_cast %8 : vector<4x1x2x32xf32> to vector<4x2x32xf32>
    %10 = arith.addf %7, %9 : vector<4x2x32xf32>
    %cst = arith.constant 2.500000e-01 : f32
    %11 = vector.broadcast %cst : f32 to vector<4x2x32xf32>
    %12 = arith.mulf %10, %11 : vector<4x2x32xf32>
    %13 = arith.mulf %12, %12 : vector<4x2x32xf32>
    %cst_6 = arith.constant dense<0.000000e+00> : vector<4x2xf32>
    %14 = vector.multi_reduction <add>, %13, %cst_6 [2] : vector<4x2x32xf32> to vector<4x2xf32>
    %15 = vector.shape_cast %14 : vector<4x2xf32> to vector<4x2x1xf32>
    %cst_7 = arith.constant 3.200000e+01 : f32
    %16 = vector.broadcast %cst_7 : f32 to vector<4x2x1xf32>
    %17 = arith.divf %15, %16 : vector<4x2x1xf32>
    %cst_8 = arith.constant 9.99999997E-7 : f32
    %18 = vector.broadcast %cst_8 : f32 to vector<4x2x1xf32>
    %19 = arith.addf %17, %18 : vector<4x2x1xf32>
    %20 = math.rsqrt %19 : vector<4x2x1xf32>
    %21 = vector.broadcast %20 : vector<4x2x1xf32> to vector<4x2x32xf32>
    %22 = arith.mulf %12, %21 : vector<4x2x32xf32>
    %c0_9 = arith.constant 0 : index
    %c0_10 = arith.constant 0 : index
    %23 = vector.load %arg2[%c0_9, %c0_10] : memref<1x32xf32, #tpu.memory_space<vmem>>, vector<1x32xf32>
    %24 = vector.shape_cast %23 : vector<1x32xf32> to vector<1x1x32xf32>
    %25 = vector.broadcast %24 : vector<1x1x32xf32> to vector<4x2x32xf32>
    %26 = arith.mulf %22, %25 : vector<4x2x32xf32>
    %27 = vector.shape_cast %26 : vector<4x2x32xf32> to vector<8x32xf32>
    %c0_11 = arith.constant 0 : index
    %c0_12 = arith.constant 0 : index
    %28 = vector.load %arg3[%c0_11, %c0_12] : memref<32x128xf32, #tpu.memory_space<vmem>>, vector<32x128xf32>
    %cst_13 = arith.constant dense<0.000000e+00> : vector<8x128xf32>
    %29 = tpu.matmul %27, %28, %cst_13 {dimension_numbers = #tpu.dot_dimension_numbers<[1], [0], [0], [1], [0, 0, 1, 1], [], []>} : vector<8x32xf32>, vector<32x128xf32>, vector<8x128xf32> -> vector<8x128xf32>
    %c0_14 = arith.constant 0 : index
    %c0_15 = arith.constant 0 : index
    %30 = vector.load %arg4[%c0_14, %c0_15] : memref<8x128xf32, #tpu.memory_space<vmem>>, vector<8x128xf32>
    tpu.vector_store %arg4[%c0_14, %c0_15], %29 {strides = array<i32>} : memref<8x128xf32, #tpu.memory_space<vmem>>, vector<8x128xf32>,
    return
  }
  func.func @transform_0(%arg0: i32) -> (i32, i32, i32, i32) {
    %c0_i32 = arith.constant 0 : i32
    %c0_i32_0 = arith.constant 0 : i32
    %c0_i32_1 = arith.constant 0 : i32
    %c0_i32_2 = arith.constant 0 : i32
    return %arg0, %c0_i32, %c0_i32_0, %c0_i32_1 : i32, i32, i32, i32
  }
  func.func @transform_1(%arg0: i32) -> (i32, i32) {
    %c0_i32 = arith.constant 0 : i32
    %c0_i32_0 = arith.constant 0 : i32
    %c0_i32_1 = arith.constant 0 : i32
    return %c0_i32, %c0_i32_0 : i32, i32
  }
  func.func @transform_2(%arg0: i32) -> (i32, i32) {
    %c0_i32 = arith.constant 0 : i32
    %c0_i32_0 = arith.constant 0 : i32
    %c0_i32_1 = arith.constant 0 : i32
    return %c0_i32, %c0_i32_0 : i32, i32
  }
  func.func @transform_3(%arg0: i32) -> (i32, i32) {
    %c0_i32 = arith.constant 0 : i32
    %c0_i32_0 = arith.constant 0 : i32
    return %arg0, %c0_i32 : i32, i32
  }
}

</mosaic_0001>

<llo_original>
// kernel: tpu_custom_call.1
$region0: #{tpu_custom_call.1}
  #allocation0 [shape = 'u32[]', space=smem, size = 0x4, offset = 0x4, fixed_abs, tag = 'smem constant byte address 0x4 - core index']
  #allocation1 [shape = 'u32[144,128]{1,0:T(1,128)}', space=vmem, size = 0x12000, scoped, tag = 'internal scratch']
  %s0 = inlined_call_operand.hbm [shape: f32[8,2,2,32], index: 0, kind: input, shape index: {}]
  %s1 = inlined_call_operand.vmem [shape: f32[1,32], index: 1, kind: input, shape index: {}]
  %s2 = inlined_call_operand.hbm [shape: f32[32,128], index: 2, kind: input, shape index: {}]
  %s3 = inlined_call_operand.hbm [shape: f32[8,128], index: 3, kind: output, shape index: {}]
  %s4 = sld [smem:[#allocation0]]
  $region30: #{tpu_custom_call.1} parent=0
    _
  %s6 = ssub.s32 1, %s4
  %s7 = scalar_select 0, %s6, %s4
  $region1: #{tpu_custom_call.1} parent=0
    #allocation2 [shape = 'u8[16384]{0}', space=vmem, size = 0x4000, scoped, tag = 'input window, operand 0, single buffered']
    #allocation3 [shape = 's32[1]{0}', space=sflag, size = 0x4, scoped, tag = 'scoped memory for tpu_custom_call.1']
    #allocation4 [shape = 's32[1]{0}', space=sflag, size = 0x4, scoped, tag = 'scoped memory for tpu_custom_call.1']
    #allocation5 [shape = 'u8[16384]{0}', space=vmem, size = 0x4000, scoped, tag = 'input window, operand 2, single buffered']
    #allocation6 [shape = 's32[1]{0}', space=sflag, size = 0x4, scoped, tag = 'scoped memory for tpu_custom_call.1']
    #allocation7 [shape = 'u8[4096]{0}', space=vmem, size = 0x1000, scoped, tag = 'output window, operand 0, single buffered']
    %8 = vsyncpa [#allocation3], 0
    %9 = vsyncpa [#allocation6], 0
    %10 = vsyncpa [#allocation4], 0
    // Predicated region
    $region2: #{tpu_custom_call.1} parent=1 // pred_check
      _
    $region3: #{tpu_custom_call.1} parent=1 // pred_check_branch
      %12 = sbr.rel (0) target = $region5
    $region4: #{tpu_custom_call.1} parent=1 // pred_region
      %s14 = ssub.s32 512, 512
      %15 = vsyncadd [#allocation3], %s14
      %s16 = sshll.u32 [#allocation2], 4
      %s17 = int_to_ptr.vmem [resolvable:$true] %s16
      %22 = dma.hbm_to_vmem [thread:$0]  %s0, 512, %s17, [#allocation3], 32, 32, 2
    $region5: #{tpu_custom_call.1} parent=1 // pred_fallthru
      _
    // Predicated region
    $region6: #{tpu_custom_call.1} parent=1 // pred_check
      _
    $region7: #{tpu_custom_call.1} parent=1 // pred_check_branch
      %24 = sbr.rel (0) target = $region9
    $region8: #{tpu_custom_call.1} parent=1 // pred_region
      _
    $region9: #{tpu_custom_call.1} parent=1 // pred_fallthru
      _
    // Predicated region
    $region10: #{tpu_custom_call.1} parent=1 // pred_check
      _
    $region11: #{tpu_custom_call.1} parent=1 // pred_check_branch
      %26 = sbr.rel (0) target = $region13
    $region12: #{tpu_custom_call.1} parent=1 // pred_region
      %s28 = ssub.s32 512, 512
      %29 = vsyncadd [#allocation6], %s28
      %s30 = sshll.u32 [#allocation5], 4
      %s31 = int_to_ptr.vmem [resolvable:$true] %s30
      %36 = dma.hbm_to_vmem [thread:$0]  %s2, 512, %s31, [#allocation6], 128, 128, 8
    $region13: #{tpu_custom_call.1} parent=1 // pred_fallthru
      _
    // Predicated region
    $region14: #{tpu_custom_call.1} parent=1 // pred_check
      _
    $region15: #{tpu_custom_call.1} parent=1 // pred_check_branch
      %38 = sbr.rel (0) target = $region17
    $region16: #{tpu_custom_call.1} parent=1 // pred_region
      %39 = dma.done [#allocation3], 512
    $region17: #{tpu_custom_call.1} parent=1 // pred_fallthru
      _
    // Predicated region
    $region18: #{tpu_custom_call.1} parent=1 // pred_check
      _
    $region19: #{tpu_custom_call.1} parent=1 // pred_check_branch
      %41 = sbr.rel (0) target = $region21
    $region20: #{tpu_custom_call.1} parent=1 // pred_region
      %42 = dma.done [#allocation6], 512
    $region21: #{tpu_custom_call.1} parent=1 // pred_fallthru
      _
    %v43 = vld [vmem:[#allocation2] sm:$0x1]
    %v44 = vld [vmem:[#allocation2 + $0x2] sm:$0x1]
    %v45 = vld [vmem:[#allocation2 + $0x4] sm:$0x1]
    %v46 = vld [vmem:[#allocation2 + $0x6] sm:$0x1]
    %v47 = vld [vmem:[#allocation2 + $0x8] sm:$0x1]
    %v48 = vld [vmem:[#allocation2 + $0xa] sm:$0x1]
    %v49 = vld [vmem:[#allocation2 + $0xc] sm:$0x1]
    %v50 = vld [vmem:[#allocation2 + $0xe] sm:$0x1]
    %v51 = vld [vmem:[#allocation2 + $0x10] sm:$0x1]
    %v52 = vld [vmem:[#allocation2 + $0x12] sm:$0x1]
    %v53 = vld [vmem:[#allocation2 + $0x14] sm:$0x1]
    %v54 = vld [vmem:[#allocation2 + $0x16] sm:$0x1]
    %v55 = vld [vmem:[#allocation2 + $0x18] sm:$0x1]
    %v56 = vld [vmem:[#allocation2 + $0x1a] sm:$0x1]
    %v57 = vld [vmem:[#allocation2 + $0x1c] sm:$0x1]
    %v58 = vld [vmem:[#allocation2 + $0x1e] sm:$0x1]
    %v59 = vld [vmem:[#allocation2 + $0x1] sm:$0x1]
    %v60 = vld [vmem:[#allocation2 + $0x3] sm:$0x1]
    %v61 = vld [vmem:[#allocation2 + $0x5] sm:$0x1]
    %v62 = vld [vmem:[#allocation2 + $0x7] sm:$0x1]
    %v63 = vld [vmem:[#allocation2 + $0x9] sm:$0x1]
    %v64 = vld [vmem:[#allocation2 + $0xb] sm:$0x1]
    %v65 = vld [vmem:[#allocation2 + $0xd] sm:$0x1]
    %v66 = vld [vmem:[#allocation2 + $0xf] sm:$0x1]
    %v67 = vld [vmem:[#allocation2 + $0x11] sm:$0x1]
    %v68 = vld [vmem:[#allocation2 + $0x13] sm:$0x1]
    %v69 = vld [vmem:[#allocation2 + $0x15] sm:$0x1]
    %v70 = vld [vmem:[#allocation2 + $0x17] sm:$0x1]
    %v71 = vld [vmem:[#allocation2 + $0x19] sm:$0x1]
    %v72 = vld [vmem:[#allocation2 + $0x1b] sm:$0x1]
    %v73 = vld [vmem:[#allocation2 + $0x1d] sm:$0x1]
    %v74 = vld [vmem:[#allocation2 + $0x1f] sm:$0x1]
    %v75 = vadd.f32 %v43, %v59
    %v76 = vadd.f32 %v44, %v60
    %v77 = vadd.f32 %v45, %v61
    %v78 = vadd.f32 %v46, %v62
    %v79 = vadd.f32 %v47, %v63
    %v80 = vadd.f32 %v48, %v64
    %v81 = vadd.f32 %v49, %v65
    %v82 = vadd.f32 %v50, %v66
    %v83 = vadd.f32 %v51, %v67
    %v84 = vadd.f32 %v52, %v68
    %v85 = vadd.f32 %v53, %v69
    %v86 = vadd.f32 %v54, %v70
    %v87 = vadd.f32 %v55, %v71
    %v88 = vadd.f32 %v56, %v72
    %v89 = vadd.f32 %v57, %v73
    %v90 = vadd.f32 %v58, %v74
    %v91 = vadd.f32 %v75, %v77
    %v92 = vadd.f32 %v76, %v78
    %v93 = vadd.f32 %v79, %v81
    %v94 = vadd.f32 %v80, %v82
    %v95 = vadd.f32 %v83, %v85
    %v96 = vadd.f32 %v84, %v86
    %v97 = vadd.f32 %v87, %v89
    %v98 = vadd.f32 %v88, %v90
    %v99 = vmul.f32 %v91, 0.25
    %v100 = vmul.f32 %v92, 0.25
    %v101 = vmul.f32 %v93, 0.25
    %v102 = vmul.f32 %v94, 0.25
    %v103 = vmul.f32 %v95, 0.25
    %v104 = vmul.f32 %v96, 0.25
    %v105 = vmul.f32 %v97, 0.25
    %v106 = vmul.f32 %v98, 0.25
    %v107 = vmul.f32 %v99, %v99
    %v108 = vmul.f32 %v100, %v100
    %v109 = vmul.f32 %v101, %v101
    %v110 = vmul.f32 %v102, %v102
    %v111 = vmul.f32 %v103, %v103
    %v112 = vmul.f32 %v104, %v104
    %v113 = vmul.f32 %v105, %v105
    %v114 = vmul.f32 %v106, %v106
    %v123 = vrot.slane %v108, 7
    %vm124 = vcmask 1041409
    %v125 = vsel %vm124, %v123, %v107
    %v126 = vrot.slane %v110, 7
    %v127 = vsel %vm124, %v126, %v109
    %v128 = vrot.slane %v112, 7
    %v129 = vsel %vm124, %v128, %v111
    %v130 = vrot.slane %v114, 7
    %v131 = vsel %vm124, %v130, %v113
    %vm136 = vcmask 254976
    %v137 = vsel %vm136, %v125, 0.0
    %138 = vadd.xlane.f32.xlu0 %v137
    %v139 = vpop.xlane.xlu0 %138
    %v140 = vsel %vm136, %v127, 0.0
    %141 = vadd.xlane.f32.xlu0 %v140
    %v142 = vpop.xlane.xlu0 %141
    %v143 = vsel %vm136, %v129, 0.0
    %144 = vadd.xlane.f32.xlu0 %v143
    %v145 = vpop.xlane.xlu0 %144
    %v146 = vsel %vm136, %v131, 0.0
    %147 = vadd.xlane.f32.xlu0 %v146
    %v148 = vpop.xlane.xlu0 %147
    %v149 = vrcp.pop 32.0
    %v150 = vmul.f32 %v139, %v149
    %v151 = vmul.f32 %v142, %v149
    %v152 = vmul.f32 %v145, %v149
    %v153 = vmul.f32 %v148, %v149
    %v154 = vadd.f32 %v150, 1e-06
    %v155 = vadd.f32 %v151, 1e-06
    %v156 = vadd.f32 %v152, 1e-06
    %v157 = vadd.f32 %v153, 1e-06
    %v158 = vrsqrt.pop %v154
    %v159 = vrsqrt.pop %v155
    %v160 = vrsqrt.pop %v156
    %v161 = vrsqrt.pop %v157
    %v166 = vrot.slane %v158, 1
    %v167 = vrot.slane %v159, 1
    %v168 = vrot.slane %v160, 1
    %v169 = vrot.slane %v161, 1
    %v178 = vmul.f32 %v99, %v158
    %v179 = vmul.f32 %v100, %v166
    %v180 = vmul.f32 %v101, %v159
    %v181 = vmul.f32 %v102, %v167
    %v182 = vmul.f32 %v103, %v160
    %v183 = vmul.f32 %v104, %v168
    %v184 = vmul.f32 %v105, %v161
    %v185 = vmul.f32 %v106, %v169
    %v186 = vld [vmem:[%s1] sm:$0x1]
    %v188 = vlaneseq
    %v189 = vshrl.u32 %v188, 7
    %v190 = vsub.s32 0, %v189
    %v191 = vrot.slane %v186, %v190
    %v193 = vmul.f32 %v178, %v191
    %v194 = vmul.f32 %v179, %v191
    %v195 = vmul.f32 %v180, %v191
    %v196 = vmul.f32 %v181, %v191
    %v197 = vmul.f32 %v182, %v191
    %v198 = vmul.f32 %v183, %v191
    %v199 = vmul.f32 %v184, %v191
    %v200 = vmul.f32 %v185, %v191
    %v201 = vld [vmem:[#allocation5] sm:$0xff]
    %v202 = vld [vmem:[#allocation5 + $0x8] sm:$0xff]
    %v203 = vld [vmem:[#allocation5 + $0x10] sm:$0xff]
    %v204 = vld [vmem:[#allocation5 + $0x18] sm:$0xff]
    %v213 = vrot.slane %v194, 7
    %v214 = vsel %vm124, %v213, %v193
    %v215 = vrot.slane %v195, 6
    %vm216 = vcmask 1042434
    %v217 = vsel %vm216, %v215, %v214
    %v218 = vrot.slane %v196, 5
    %vm219 = vcmask 1043459
    %v220 = vsel %vm219, %v218, %v217
    %v221 = vrot.slane %v197, 4
    %vm222 = vcmask 1044484
    %v223 = vsel %vm222, %v221, %v220
    %v224 = vrot.slane %v198, 3
    %vm225 = vcmask 1045509
    %v226 = vsel %vm225, %v224, %v223
    %v227 = vrot.slane %v199, 2
    %vm228 = vcmask 1046534
    %v229 = vsel %vm228, %v227, %v226
    %v230 = vrot.slane %v200, 1
    %vm231 = vcmask 1047559
    %v232 = vsel %vm231, %v230, %v229
    %vm233 = vcmask 261120
    %v234 = vsel %vm233, %v232, 0
    %236 = vmatprep.subr.mxu0 0.0
    %237 = vmatpush1.msra.mxu0 %v201
    %238 = vmatprep.subr.mxu0 0.0
    %239 = vmatpush1.msra.mxu0 %v202
    %240 = vmatprep.subr.mxu0 0.0
    %241 = vmatpush1.msra.mxu0 %v203
    %242 = vmatprep.subr.mxu0 0.0
    %243 = vmatpush1.msra.mxu0 %v204
    %244 = vmatprep.subr.mxu0 0.0
    %245 = vmatpush1.msra.mxu0 0.0
    %246 = vmatprep.subr.mxu0 0.0
    %247 = vmatpush1.msra.mxu0 0.0
    %248 = vmatprep.subr.mxu0 0.0
    %249 = vmatpush1.msra.mxu0 0.0
    %250 = vmatprep.subr.mxu0 0.0
    %251 = vmatpush1.msra.mxu0 0.0
    %252 = vmatprep.subr.mxu0 0.0
    %253 = vmatpush1.msra.mxu0 0.0
    %254 = vmatprep.subr.mxu0 0.0
    %255 = vmatpush1.msra.mxu0 0.0
    %256 = vmatprep.subr.mxu0 0.0
    %257 = vmatpush1.msra.mxu0 0.0
    %258 = vmatprep.subr.mxu0 0.0
    %259 = vmatpush1.msra.mxu0 0.0
    %260 = vmatprep.subr.mxu0 0.0
    %261 = vmatpush1.msra.mxu0 0.0
    %262 = vmatprep.subr.mxu0 0.0
    %263 = vmatpush1.msra.mxu0 0.0
    %264 = vmatprep.subr.mxu0 0.0
    %265 = vmatpush1.msra.mxu0 0.0
    %266 = vmatprep.subr.mxu0 0.0
    %267 = vmatpush1.msra.mxu0 0.0
    %268 = vmatprep.subr.mxu0 0.0
    %269 = vmatpush1.msra.mxu0 0.0
    %270 = vmatprep.subr.mxu0 0.0
    %271 = vmatpush1.msra.mxu0 0.0
    %272 = vmatprep.subr.mxu0 0.0
    %273 = vmatpush1.msra.mxu0 0.0
    %274 = vmatprep.subr.mxu0 0.0
    %275 = vmatpush1.msra.mxu0 0.0
    %276 = vmatprep.subr.mxu0 0.0
    %277 = vmatpush1.msra.mxu0 0.0
    %278 = vmatprep.subr.mxu0 0.0
    %279 = vmatpush1.msra.mxu0 0.0
    %280 = vmatprep.subr.mxu0 0.0
    %281 = vmatpush1.msra.mxu0 0.0
    %282 = vmatprep.subr.mxu0 0.0
    %283 = vmatpush1.msra.mxu0 0.0
    %284 = vmatprep.subr.mxu0 0.0
    %285 = vmatpush1.msra.mxu0 0.0
    %286 = vmatprep.subr.mxu0 0.0
    %287 = vmatpush1.msra.mxu0 0.0
    %288 = vmatprep.subr.mxu0 0.0
    %289 = vmatpush1.msra.mxu0 0.0
    %290 = vmatprep.subr.mxu0 0.0
    %291 = vmatpush1.msra.mxu0 0.0
    %292 = vmatprep.subr.mxu0 0.0
    %293 = vmatpush1.msra.mxu0 0.0
    %294 = vmatprep.subr.mxu0 0.0
    %295 = vmatpush1.msra.mxu0 0.0
    %296 = vmatprep.subr.mxu0 0.0
    %297 = vmatpush1.msra.mxu0 0.0
    %298 = vmatprep.subr.mxu0 0.0
    %299 = vmatpush1.msra.mxu0 0.0
    %300 = vmatprep.mubr.f32.mxu0 0.0
    %301 = vmatmul.mubr.f32.gmra.mrb[0].mxu0 %v234
    %v302 = vpop.f32.mrb[0].mxu0
    %v303 = vadd.f32 0.0, %v302
    %v304 = vpop.f32.mrb[0].mxu0
    %305 = vdwg.mxu0
    %306 = vst [vmem:[#allocation7] sm:$0xff] %v303
    // Predicated region
    $region22: #{tpu_custom_call.1} parent=1 // pred_check
      _
    $region23: #{tpu_custom_call.1} parent=1 // pred_check_branch
      %308 = sbr.rel (0) target = $region25
    $region24: #{tpu_custom_call.1} parent=1 // pred_region
      %s310 = ssub.s32 128, 128
      %311 = vsyncadd [#allocation4], %s310
      %s313 = sshll.u32 [#allocation7], 4
      %s314 = int_to_ptr.vmem [resolvable:$true] %s313
      %316 = dma.vmem_to_hbm [thread:$0]  %s314, 128, %s3, [#allocation4]
    $region25: #{tpu_custom_call.1} parent=1 // pred_fallthru
      _
    // Predicated region
    $region26: #{tpu_custom_call.1} parent=1 // pred_check
      _
    $region27: #{tpu_custom_call.1} parent=1 // pred_check_branch
      %318 = sbr.rel (0) target = $region29
    $region28: #{tpu_custom_call.1} parent=1 // pred_region
      %319 = dma.done [#allocation4], 128
    $region29: #{tpu_custom_call.1} parent=1 // pred_fallthru
      _
    %320 = vsyncpa [#allocation3], 1
    %321 = vsyncpa [#allocation6], 1
    %322 = vsyncpa [#allocation4], 1

// kernel: tpu_custom_call.1
$region0: #{tpu_custom_call.1}
  #allocation0 [shape = 'u32[]', space=smem, size = 0x4, offset = 0x4, fixed_abs, tag = 'smem constant byte address 0x4 - core index']
  #allocation1 [shape = 'u32[144,128]{1,0:T(1,128)}', space=vmem, size = 0x12000, scoped, tag = 'internal scratch']
  %s0 = inlined_call_operand.hbm [shape: f32[8,2,2,32], index: 0, kind: input, shape index: {}]
  %s1 = inlined_call_operand.vmem [shape: f32[1,32], index: 1, kind: input, shape index: {}]
  %s2 = inlined_call_operand.hbm [shape: f32[32,128], index: 2, kind: input, shape index: {}]
  %s3 = inlined_call_operand.hbm [shape: f32[8,128], index: 3, kind: output, shape index: {}]
  %s4 = sld [smem:[#allocation0]]
  $region30: #{tpu_custom_call.1} parent=0
    _
  %s6 = ssub.s32 1, %s4
  %s7 = scalar_select 0, %s6, %s4
  $region1: #{tpu_custom_call.1} parent=0
    #allocation2 [shape = 'u8[16384]{0}', space=vmem, size = 0x4000, scoped, tag = 'input window, operand 0, single buffered']
    #allocation3 [shape = 's32[1]{0}', space=sflag, size = 0x4, scoped, tag = 'scoped memory for tpu_custom_call.1']
    #allocation4 [shape = 's32[1]{0}', space=sflag, size = 0x4, scoped, tag = 'scoped memory for tpu_custom_call.1']
    #allocation5 [shape = 'u8[16384]{0}', space=vmem, size = 0x4000, scoped, tag = 'input window, operand 2, single buffered']
    #allocation6 [shape = 's32[1]{0}', space=sflag, size = 0x4, scoped, tag = 'scoped memory for tpu_custom_call.1']
    #allocation7 [shape = 'u8[4096]{0}', space=vmem, size = 0x1000, scoped, tag = 'output window, operand 0, single buffered']
    %8 = vsyncpa [#allocation3], 0
    %9 = vsyncpa [#allocation6], 0
    %10 = vsyncpa [#allocation4], 0
    // Predicated region
    $region2: #{tpu_custom_call.1} parent=1 // pred_check
      _
    $region3: #{tpu_custom_call.1} parent=1 // pred_check_branch
      %12 = sbr.rel (0) target = $region5
    $region4: #{tpu_custom_call.1} parent=1 // pred_region
      %s14 = ssub.s32 512, 512
      %15 = vsyncadd [#allocation3], %s14
      %s16 = sshll.u32 [#allocation2], 4
      %s17 = int_to_ptr.vmem [resolvable:$true] %s16
      %22 = dma.hbm_to_vmem [thread:$0]  %s0, 512, %s17, [#allocation3], 32, 32, 2
    $region5: #{tpu_custom_call.1} parent=1 // pred_fallthru
      _
    // Predicated region
    $region6: #{tpu_custom_call.1} parent=1 // pred_check
      _
    $region7: #{tpu_custom_call.1} parent=1 // pred_check_branch
      %24 = sbr.rel (0) target = $region9
    $region8: #{tpu_custom_call.1} parent=1 // pred_region
      _
    $region9: #{tpu_custom_call.1} parent=1 // pred_fallthru
      _
    // Predicated region
    $region10: #{tpu_custom_call.1} parent=1 // pred_check
      _
    $region11: #{tpu_custom_call.1} parent=1 // pred_check_branch
      %26 = sbr.rel (0) target = $region13
    $region12: #{tpu_custom_call.1} parent=1 // pred_region
      %s28 = ssub.s32 512, 512
      %29 = vsyncadd [#allocation6], %s28
      %s30 = sshll.u32 [#allocation5], 4
      %s31 = int_to_ptr.vmem [resolvable:$true] %s30
      %36 = dma.hbm_to_vmem [thread:$0]  %s2, 512, %s31, [#allocation6], 128, 128, 8
    $region13: #{tpu_custom_call.1} parent=1 // pred_fallthru
      _
    // Predicated region
    $region14: #{tpu_custom_call.1} parent=1 // pred_check
      _
    $region15: #{tpu_custom_call.1} parent=1 // pred_check_branch
      %38 = sbr.rel (0) target = $region17
    $region16: #{tpu_custom_call.1} parent=1 // pred_region
      %39 = dma.done [#allocation3], 512
    $region17: #{tpu_custom_call.1} parent=1 // pred_fallthru
      _
    // Predicated region
    $region18: #{tpu_custom_call.1} parent=1 // pred_check
      _
    $region19: #{tpu_custom_call.1} parent=1 // pred_check_branch
      %41 = sbr.rel (0) target = $region21
    $region20: #{tpu_custom_call.1} parent=1 // pred_region
      %42 = dma.done [#allocation6], 512
    $region21: #{tpu_custom_call.1} parent=1 // pred_fallthru
      _
    %v43 = vld [vmem:[#allocation2] sm:$0x1]
    %v44 = vld [vmem:[#allocation2 + $0x2] sm:$0x1]
    %v45 = vld [vmem:[#allocation2 + $0x4] sm:$0x1]
    %v46 = vld [vmem:[#allocation2 + $0x6] sm:$0x1]
    %v47 = vld [vmem:[#allocation2 + $0x8] sm:$0x1]
    %v48 = vld [vmem:[#allocation2 + $0xa] sm:$0x1]
    %v49 = vld [vmem:[#allocation2 + $0xc] sm:$0x1]
    %v50 = vld [vmem:[#allocation2 + $0xe] sm:$0x1]
    %v51 = vld [vmem:[#allocation2 + $0x10] sm:$0x1]
    %v52 = vld [vmem:[#allocation2 + $0x12] sm:$0x1]
    %v53 = vld [vmem:[#allocation2 + $0x14] sm:$0x1]
    %v54 = vld [vmem:[#allocation2 + $0x16] sm:$0x1]
    %v55 = vld [vmem:[#allocation2 + $0x18] sm:$0x1]
    %v56 = vld [vmem:[#allocation2 + $0x1a] sm:$0x1]
    %v57 = vld [vmem:[#allocation2 + $0x1c] sm:$0x1]
    %v58 = vld [vmem:[#allocation2 + $0x1e] sm:$0x1]
    %v59 = vld [vmem:[#allocation2 + $0x1] sm:$0x1]
    %v60 = vld [vmem:[#allocation2 + $0x3] sm:$0x1]
    %v61 = vld [vmem:[#allocation2 + $0x5] sm:$0x1]
    %v62 = vld [vmem:[#allocation2 + $0x7] sm:$0x1]
    %v63 = vld [vmem:[#allocation2 + $0x9] sm:$0x1]
    %v64 = vld [vmem:[#allocation2 + $0xb] sm:$0x1]
    %v65 = vld [vmem:[#allocation2 + $0xd] sm:$0x1]
    %v66 = vld [vmem:[#allocation2 + $0xf] sm:$0x1]
    %v67 = vld [vmem:[#allocation2 + $0x11] sm:$0x1]
    %v68 = vld [vmem:[#allocation2 + $0x13] sm:$0x1]
    %v69 = vld [vmem:[#allocation2 + $0x15] sm:$0x1]
    %v70 = vld [vmem:[#allocation2 + $0x17] sm:$0x1]
    %v71 = vld [vmem:[#allocation2 + $0x19] sm:$0x1]
    %v72 = vld [vmem:[#allocation2 + $0x1b] sm:$0x1]
    %v73 = vld [vmem:[#allocation2 + $0x1d] sm:$0x1]
    %v74 = vld [vmem:[#allocation2 + $0x1f] sm:$0x1]
    %v75 = vadd.f32 %v43, %v59
    %v76 = vadd.f32 %v44, %v60
    %v77 = vadd.f32 %v45, %v61
    %v78 = vadd.f32 %v46, %v62
    %v79 = vadd.f32 %v47, %v63
    %v80 = vadd.f32 %v48, %v64
    %v81 = vadd.f32 %v49, %v65
    %v82 = vadd.f32 %v50, %v66
    %v83 = vadd.f32 %v51, %v67
    %v84 = vadd.f32 %v52, %v68
    %v85 = vadd.f32 %v53, %v69
    %v86 = vadd.f32 %v54, %v70
    %v87 = vadd.f32 %v55, %v71
    %v88 = vadd.f32 %v56, %v72
    %v89 = vadd.f32 %v57, %v73
    %v90 = vadd.f32 %v58, %v74
    %v91 = vadd.f32 %v75, %v77
    %v92 = vadd.f32 %v76, %v78
    %v93 = vadd.f32 %v79, %v81
    %v94 = vadd.f32 %v80, %v82
    %v95 = vadd.f32 %v83, %v85
    %v96 = vadd.f32 %v84, %v86
    %v97 = vadd.f32 %v87, %v89
    %v98 = vadd.f32 %v88, %v90
    %v99 = vmul.f32 %v91, 0.25
    %v100 = vmul.f32 %v92, 0.25
    %v101 = vmul.f32 %v93, 0.25
    %v102 = vmul.f32 %v94, 0.25
    %v103 = vmul.f32 %v95, 0.25
    %v104 = vmul.f32 %v96, 0.25
    %v105 = vmul.f32 %v97, 0.25
    %v106 = vmul.f32 %v98, 0.25
    %v107 = vmul.f32 %v99, %v99
    %v108 = vmul.f32 %v100, %v100
    %v109 = vmul.f32 %v101, %v101
    %v110 = vmul.f32 %v102, %v102
    %v111 = vmul.f32 %v103, %v103
    %v112 = vmul.f32 %v104, %v104
    %v113 = vmul.f32 %v105, %v105
    %v114 = vmul.f32 %v106, %v106
    %v123 = vrot.slane %v108, 7
    %vm124 = vcmask 1041409
    %v125 = vsel %vm124, %v123, %v107
    %v126 = vrot.slane %v110, 7
    %v127 = vsel %vm124, %v126, %v109
    %v128 = vrot.slane %v112, 7
    %v129 = vsel %vm124, %v128, %v111
    %v130 = vrot.slane %v114, 7
    %v131 = vsel %vm124, %v130, %v113
    %vm136 = vcmask 254976
    %v137 = vsel %vm136, %v125, 0.0
    %138 = vadd.xlane.f32.xlu0 %v137
    %v139 = vpop.xlane.xlu0 %138
    %v140 = vsel %vm136, %v127, 0.0
    %141 = vadd.xlane.f32.xlu0 %v140
    %v142 = vpop.xlane.xlu0 %141
    %v143 = vsel %vm136, %v129, 0.0
    %144 = vadd.xlane.f32.xlu0 %v143
    %v145 = vpop.xlane.xlu0 %144
    %v146 = vsel %vm136, %v131, 0.0
    %147 = vadd.xlane.f32.xlu0 %v146
    %v148 = vpop.xlane.xlu0 %147
    %v149 = vrcp.pop 32.0
    %v150 = vmul.f32 %v139, %v149
    %v151 = vmul.f32 %v142, %v149
    %v152 = vmul.f32 %v145, %v149
    %v153 = vmul.f32 %v148, %v149
    %v154 = vadd.f32 %v150, 1e-06
    %v155 = vadd.f32 %v151, 1e-06
    %v156 = vadd.f32 %v152, 1e-06
    %v157 = vadd.f32 %v153, 1e-06
    %v158 = vrsqrt.pop %v154
    %v159 = vrsqrt.pop %v155
    %v160 = vrsqrt.pop %v156
    %v161 = vrsqrt.pop %v157
    %v166 = vrot.slane %v158, 1
    %v167 = vrot.slane %v159, 1
    %v168 = vrot.slane %v160, 1
    %v169 = vrot.slane %v161, 1
    %v178 = vmul.f32 %v99, %v158
    %v179 = vmul.f32 %v100, %v166
    %v180 = vmul.f32 %v101, %v159
    %v181 = vmul.f32 %v102, %v167
    %v182 = vmul.f32 %v103, %v160
    %v183 = vmul.f32 %v104, %v168
    %v184 = vmul.f32 %v105, %v161
    %v185 = vmul.f32 %v106, %v169
    %v186 = vld [vmem:[%s1] sm:$0x1]
    %v188 = vlaneseq
    %v189 = vshrl.u32 %v188, 7
    %v190 = vsub.s32 0, %v189
    %v191 = vrot.slane %v186, %v190
    %v193 = vmul.f32 %v178, %v191
    %v194 = vmul.f32 %v179, %v191
    %v195 = vmul.f32 %v180, %v191
    %v196 = vmul.f32 %v181, %v191
    %v197 = vmul.f32 %v182, %v191
    %v198 = vmul.f32 %v183, %v191
    %v199 = vmul.f32 %v184, %v191
    %v200 = vmul.f32 %v185, %v191
    %v201 = vld [vmem:[#allocation5] sm:$0xff]
    %v202 = vld [vmem:[#allocation5 + $0x8] sm:$0xff]
    %v203 = vld [vmem:[#allocation5 + $0x10] sm:$0xff]
    %v204 = vld [vmem:[#allocation5 + $0x18] sm:$0xff]
    %v213 = vrot.slane %v194, 7
    %v214 = vsel %vm124, %v213, %v193
    %v215 = vrot.slane %v195, 6
    %vm216 = vcmask 1042434
    %v217 = vsel %vm216, %v215, %v214
    %v218 = vrot.slane %v196, 5
    %vm219 = vcmask 1043459
    %v220 = vsel %vm219, %v218, %v217
    %v221 = vrot.slane %v197, 4
    %vm222 = vcmask 1044484
    %v223 = vsel %vm222, %v221, %v220
    %v224 = vrot.slane %v198, 3
    %vm225 = vcmask 1045509
    %v226 = vsel %vm225, %v224, %v223
    %v227 = vrot.slane %v199, 2
    %vm228 = vcmask 1046534
    %v229 = vsel %vm228, %v227, %v226
    %v230 = vrot.slane %v200, 1
    %vm231 = vcmask 1047559
    %v232 = vsel %vm231, %v230, %v229
    %vm233 = vcmask 261120
    %v234 = vsel %vm233, %v232, 0
    %236 = vmatprep.subr.mxu0 0.0
    %237 = vmatpush1.msra.mxu0 %v201
    %238 = vmatprep.subr.mxu0 0.0
    %239 = vmatpush1.msra.mxu0 %v202
    %240 = vmatprep.subr.mxu0 0.0
    %241 = vmatpush1.msra.mxu0 %v203
    %242 = vmatprep.subr.mxu0 0.0
    %243 = vmatpush1.msra.mxu0 %v204
    %244 = vmatprep.subr.mxu0 0.0
    %245 = vmatpush1.msra.mxu0 0.0
    %246 = vmatprep.subr.mxu0 0.0
    %247 = vmatpush1.msra.mxu0 0.0
    %248 = vmatprep.subr.mxu0 0.0
    %249 = vmatpush1.msra.mxu0 0.0
    %250 = vmatprep.subr.mxu0 0.0
    %251 = vmatpush1.msra.mxu0 0.0
    %252 = vmatprep.subr.mxu0 0.0
    %253 = vmatpush1.msra.mxu0 0.0
    %254 = vmatprep.subr.mxu0 0.0
    %255 = vmatpush1.msra.mxu0 0.0
    %256 = vmatprep.subr.mxu0 0.0
    %257 = vmatpush1.msra.mxu0 0.0
    %258 = vmatprep.subr.mxu0 0.0
    %259 = vmatpush1.msra.mxu0 0.0
    %260 = vmatprep.subr.mxu0 0.0
    %261 = vmatpush1.msra.mxu0 0.0
    %262 = vmatprep.subr.mxu0 0.0
    %263 = vmatpush1.msra.mxu0 0.0
    %264 = vmatprep.subr.mxu0 0.0
    %265 = vmatpush1.msra.mxu0 0.0
    %266 = vmatprep.subr.mxu0 0.0
    %267 = vmatpush1.msra.mxu0 0.0
    %268 = vmatprep.subr.mxu0 0.0
    %269 = vmatpush1.msra.mxu0 0.0
    %270 = vmatprep.subr.mxu0 0.0
    %271 = vmatpush1.msra.mxu0 0.0
    %272 = vmatprep.subr.mxu0 0.0
    %273 = vmatpush1.msra.mxu0 0.0
    %274 = vmatprep.subr.mxu0 0.0
    %275 = vmatpush1.msra.mxu0 0.0
    %276 = vmatprep.subr.mxu0 0.0
    %277 = vmatpush1.msra.mxu0 0.0
    %278 = vmatprep.subr.mxu0 0.0
    %279 = vmatpush1.msra.mxu0 0.0
    %280 = vmatprep.subr.mxu0 0.0
    %281 = vmatpush1.msra.mxu0 0.0
    %282 = vmatprep.subr.mxu0 0.0
    %283 = vmatpush1.msra.mxu0 0.0
    %284 = vmatprep.subr.mxu0 0.0
    %285 = vmatpush1.msra.mxu0 0.0
    %286 = vmatprep.subr.mxu0 0.0
    %287 = vmatpush1.msra.mxu0 0.0
    %288 = vmatprep.subr.mxu0 0.0
    %289 = vmatpush1.msra.mxu0 0.0
    %290 = vmatprep.subr.mxu0 0.0
    %291 = vmatpush1.msra.mxu0 0.0
    %292 = vmatprep.subr.mxu0 0.0
    %293 = vmatpush1.msra.mxu0 0.0
    %294 = vmatprep.subr.mxu0 0.0
    %295 = vmatpush1.msra.mxu0 0.0
    %296 = vmatprep.subr.mxu0 0.0
    %297 = vmatpush1.msra.mxu0 0.0
    %298 = vmatprep.subr.mxu0 0.0
    %299 = vmatpush1.msra.mxu0 0.0
    %300 = vmatprep.mubr.f32.mxu0 0.0
    %301 = vmatmul.mubr.f32.gmra.mrb[0].mxu0 %v234
    %v302 = vpop.f32.mrb[0].mxu0
    %v303 = vadd.f32 0.0, %v302
    %v304 = vpop.f32.mrb[0].mxu0
    %305 = vdwg.mxu0
    %306 = vst [vmem:[#allocation7] sm:$0xff] %v303
    // Predicated region
    $region22: #{tpu_custom_call.1} parent=1 // pred_check
      _
    $region23: #{tpu_custom_call.1} parent=1 // pred_check_branch
      %308 = sbr.rel (0) target = $region25
    $region24: #{tpu_custom_call.1} parent=1 // pred_region
      %s310 = ssub.s32 128, 128
      %311 = vsyncadd [#allocation4], %s310
      %s313 = sshll.u32 [#allocation7], 4
      %s314 = int_to_ptr.vmem [resolvable:$true] %s313
      %316 = dma.vmem_to_hbm [thread:$0]  %s314, 128, %s3, [#allocation4]
    $region25: #{tpu_custom_call.1} parent=1 // pred_fallthru
      _
    // Predicated region
    $region26: #{tpu_custom_call.1} parent=1 // pred_check
      _
    $region27: #{tpu_custom_call.1} parent=1 // pred_check_branch
      %318 = sbr.rel (0) target = $region29
    $region28: #{tpu_custom_call.1} parent=1 // pred_region
      %319 = dma.done [#allocation4], 128
    $region29: #{tpu_custom_call.1} parent=1 // pred_fallthru
      _
    %320 = vsyncpa [#allocation3], 1
    %321 = vsyncpa [#allocation6], 1
    %322 = vsyncpa [#allocation4], 1

</llo_original>
